<compile_context>
chip_gen: v5e
topology: v5e:2x2
jax: 0.10.0
libtpu: 0.0.40
codegen_flags: <defaults>
</compile_context>

<pallas_src>
import functools

import jax
import jax.numpy as jnp
from jax import lax
from jax.experimental import pallas as pl
from jax.experimental.pallas import tpu as pltpu

_LANES = 128
_EPS = 1e-6


def _num_tensorcores() -> int:
    """Best-effort TensorCores-per-chip (2 on v7x, 1 on v5e/v6e)."""
    # TODO(synk): if profiling shows the size-2 "parallel" axis does not shard
    # across v7x's two cores, switch that axis to pltpu.CORE_PARALLEL.
    try:
        info = pltpu.get_tpu_info()
        for name in ("num_cores", "num_tensorcores", "tensorcores_per_chip",
                     "cores_per_chip", "core_count"):
            v = getattr(info, name, None)
            if isinstance(v, int) and 1 <= v <= 8:
                return v
    except Exception:
        pass
    return 1


def _rmse_partial_kernel(x_ref, y_ref, o_ref, *, rows, tile_rows, chunk_rows,
                         acc_rows, steps_per_split, total_steps,
                         has_duplicates):
    """Accumulates per-split partial sums of (x - y)^2 into o_ref (acc_rows, 128)."""
    c = pl.program_id(0)              # core split ("parallel" axis)
    i = pl.program_id(1)              # reduction step ("arbitrary" axis)
    blk = c * steps_per_split + i     # logical (unclamped) block index

    @pl.when(i == 0)
    def _init():
        o_ref[...] = jnp.zeros_like(o_ref)

    num_chunks = tile_rows // chunk_rows
    row0 = blk * tile_rows            # global first row of this tile

    def _chunk_sum(r0, acc, masked):
        xs = x_ref[pl.ds(r0, chunk_rows), :].astype(jnp.float32)
        ys = y_ref[pl.ds(r0, chunk_rows), :].astype(jnp.float32)
        d = xs - ys
        dd = d * d
        if masked:
            # Partial last block: the out-of-bounds tail of the DMA'd tile
            # holds unspecified data; zero anything at/after row `rows`.
            local = lax.broadcasted_iota(jnp.int32, dd.shape, 0)
            dd = jnp.where(row0 + r0 + local < rows, dd, 0.0)
        # chunk_rows -> acc_rows via tile-aligned static slices: pure VPU adds
        # on independent vreg groups, no cross-lane XLU work in the hot loop.
        part = dd[0:acc_rows]
        for s in range(acc_rows, chunk_rows, acc_rows):
            part = part + dd[s:s + acc_rows]
        return acc + part

    def _accumulate(masked):
        zero = jnp.zeros((acc_rows, _LANES), jnp.float32)
        if num_chunks == 1:
            acc = _chunk_sum(0, zero, masked)
        else:
            def body(ci, acc):
                r0 = pl.multiple_of(ci * chunk_rows, chunk_rows)
                return _chunk_sum(r0, acc, masked)
            acc = lax.fori_loop(0, num_chunks, body, zero,
                                unroll=min(4, num_chunks))
        o_ref[...] += acc

    last_partial = (rows % tile_rows) != 0   # static

    if last_partial:
        # Hot path: guaranteed-full blocks accumulate unmasked.
        @pl.when(blk < total_steps - 1)
        def _full_blocks():
            _accumulate(masked=False)

        # Only the true last block pays for the row mask; clamped duplicate
        # blocks (blk >= total_steps) skip compute entirely.
        @pl.when(blk == total_steps - 1)
        def _last_block():
            _accumulate(masked=True)
    elif has_duplicates:
        @pl.when(blk < total_steps)
        def _real_blocks():
            _accumulate(masked=False)
    else:
        _accumulate(masked=False)


def rmse_loss(x, y, *, tile_rows=4096, chunk_rows=128, acc_rows=64,
              num_splits=None):
    """sqrt(mean((x - y)^2) + 1e-6), matching the PyTorch RMSELoss module."""
    assert x.shape == y.shape, "x and y must have the same shape"
    n = x.size
    xf = x.reshape(-1)
    yf = y.reshape(-1)

    # Only ragged sizes (n % 128 != 0) pay a copy; multiples of one lane row
    # pass through with a free reshape.  Zero padding contributes 0 to the sum.
    # TODO(synk): a manual-DMA 1-D path could remove this copy for ragged n.
    rem = n % _LANES
    if rem:
        xf = jnp.pad(xf, (0, _LANES - rem))
        yf = jnp.pad(yf, (0, _LANES - rem))

    rows = xf.shape[0] // _LANES
    x2 = xf.reshape(rows, _LANES)
    y2 = yf.reshape(rows, _LANES)

    # Sublane packing unit: 8 rows/vreg for 32-bit, 16 for 16-bit, 32 for 8-bit.
    itemsize = min(jnp.dtype(x.dtype).itemsize, jnp.dtype(y.dtype).itemsize)
    row_unit = 8 * max(1, 4 // max(1, itemsize))

    if rows < row_unit:
        # Tiny input: one block equal to the full array (always legal).
        tile_rows = chunk_rows = acc_rows = rows
    elif rows < chunk_rows:
        # Small input: a single chunk rounded down to the packing unit; a
        # possible partial last block is handled by the in-kernel mask.
        tile_rows = chunk_rows = (rows // row_unit) * row_unit
        acc_rows = max(a for a in (64, 32, 16, 8) if tile_rows % a == 0)
    else:
        # Streaming path: big lane-dense tiles consumed in chunk_rows slices.
        req = max(chunk_rows, (tile_rows // chunk_rows) * chunk_rows)
        tile_rows = min(req, (rows // chunk_rows) * chunk_rows)

    total_steps = pl.cdiv(rows, tile_rows)
    if num_splits is None:
        num_splits = _num_tensorcores()
    num_splits = max(1, min(num_splits, total_steps))
    steps_per_split = pl.cdiv(total_steps, num_splits)
    has_duplicates = (num_splits * steps_per_split) != total_steps

    def in_map(c, i):
        blk = c * steps_per_split + i
        # Clamp for uneven splits; the kernel skips compute on duplicates.
        return (jnp.minimum(blk, total_steps - 1), 0)

    kernel = functools.partial(
        _rmse_partial_kernel,
        rows=rows, tile_rows=tile_rows, chunk_rows=chunk_rows,
        acc_rows=acc_rows, steps_per_split=steps_per_split,
        total_steps=total_steps, has_duplicates=has_duplicates)

    partials = pl.pallas_call(
        kernel,
        out_shape=jax.ShapeDtypeStruct((num_splits, acc_rows, _LANES),
                                       jnp.float32),
        grid_spec=pltpu.PrefetchScalarGridSpec(
            num_scalar_prefetch=0,
            grid=(num_splits, steps_per_split),
            in_specs=[
                pl.BlockSpec((tile_rows, _LANES), in_map),
                pl.BlockSpec((tile_rows, _LANES), in_map),
            ],
            out_specs=pl.BlockSpec((None, acc_rows, _LANES),
                                   lambda c, i: (c, 0, 0)),
        ),
        compiler_params=pltpu.CompilerParams(
            dimension_semantics=("parallel", "arbitrary"),
            vmem_limit_bytes=32 * 1024 * 1024,
        ),
    )(x2, y2)

    # Tiny finalize over <= num_splits * 64 * 128 partial bins: mean + sqrt.
    total = jnp.sum(partials)
    return jnp.sqrt(total / jnp.float32(n) + jnp.float32(_EPS))


if __name__ == "__main__":
    key = jax.random.PRNGKey(0)
    kx, ky = jax.random.split(key)
    # Small NCHW inputs, consistent with a typical regression target.
    x = jax.random.normal(kx, (2, 4, 16, 16), dtype=jnp.float32)
    y = jax.random.normal(ky, (2, 4, 16, 16), dtype=jnp.float32)

    loss_fn = jax.jit(rmse_loss)
    loss = jax.block_until_ready(loss_fn(x, y))

    # Reference check against plain JAX (same math as torch MSELoss + sqrt).
    ref = jnp.sqrt(jnp.mean((x - y) ** 2) + _EPS)
    assert jnp.allclose(loss, ref, rtol=1e-5, atol=1e-6), (loss, ref)

    print("KERNEL_OK")
</pallas_src>

<mosaic_0001>
module attributes {stable_mosaic.version = 11 : i64} {
  func.func @_rmse_partial_kernel(%arg0: i32, %arg1: i32, %arg2: memref<16x128xf32, #tpu.memory_space<vmem>>, %arg3: memref<16x128xf32, #tpu.memory_space<vmem>>, %arg4: memref<1x16x128xf32, #tpu.memory_space<vmem>>) attributes {dimension_semantics = [#tpu.dimension_semantics<parallel>, #tpu.dimension_semantics<arbitrary>], iteration_bounds = array<i64: 1, 1>, scalar_prefetch = 0 : i64, scratch_operands = 0 : i64, tpu.core_type = #tpu.core_type<tc>, window_params = [{transform_indices = @transform_0, window_bounds = array<i64: 16, 128>}, {transform_indices = @transform_1, window_bounds = array<i64: 16, 128>}, {transform_indices = @transform_2, window_bounds = array<i64: 1, 16, 128>}]} {
    %c0_i32 = arith.constant 0 : i32
    %0 = arith.cmpi eq, %arg1, %c0_i32 : i32
    %1 = arith.extui %0 : i1 to i32
    %c0_i32_0 = arith.constant 0 : i32
    %2 = arith.cmpi ne, %1, %c0_i32_0 : i32
    scf.if %2 {
      %cst_10 = arith.constant 0.000000e+00 : f32
      %15 = vector.broadcast %cst_10 : f32 to vector<16x128xf32>
      %c0_11 = arith.constant 0 : index
      %c0_12 = arith.constant 0 : index
      %c0_13 = arith.constant 0 : index
      %16 = vector.load %arg4[%c0_11, %c0_12, %c0_13] : memref<1x16x128xf32, #tpu.memory_space<vmem>>, vector<1x16x128xf32>
      %17 = vector.shape_cast %16 : vector<1x16x128xf32> to vector<16x128xf32>
      %18 = vector.shape_cast %15 : vector<16x128xf32> to vector<1x16x128xf32>
      tpu.vector_store %arg4[%c0_11, %c0_12, %c0_13], %18 {strides = array<i32>} : memref<1x16x128xf32, #tpu.memory_space<vmem>>, vector<1x16x128xf32>,
    } else {
    }
    %cst = arith.constant 0.000000e+00 : f32
    %3 = vector.broadcast %cst : f32 to vector<16x128xf32>
    %c0 = arith.constant 0 : index
    %c0_1 = arith.constant 0 : index
    %4 = vector.load %arg2[%c0, %c0_1] : memref<16x128xf32, #tpu.memory_space<vmem>>, vector<16x128xf32>
    %c0_2 = arith.constant 0 : index
    %c0_3 = arith.constant 0 : index
    %5 = vector.load %arg3[%c0_2, %c0_3] : memref<16x128xf32, #tpu.memory_space<vmem>>, vector<16x128xf32>
    %6 = arith.subf %4, %5 : vector<16x128xf32>
    %7 = arith.mulf %6, %6 : vector<16x128xf32>
    %8 = arith.addf %3, %7 : vector<16x128xf32>
    %c0_4 = arith.constant 0 : index
    %c0_5 = arith.constant 0 : index
    %c0_6 = arith.constant 0 : index
    %9 = vector.load %arg4[%c0_4, %c0_5, %c0_6] : memref<1x16x128xf32, #tpu.memory_space<vmem>>, vector<1x16x128xf32>
    %10 = vector.shape_cast %9 : vector<1x16x128xf32> to vector<16x128xf32>
    %11 = arith.addf %10, %8 : vector<16x128xf32>
    %c0_7 = arith.constant 0 : index
    %c0_8 = arith.constant 0 : index
    %c0_9 = arith.constant 0 : index
    %12 = vector.load %arg4[%c0_7, %c0_8, %c0_9] : memref<1x16x128xf32, #tpu.memory_space<vmem>>, vector<1x16x128xf32>
    %13 = vector.shape_cast %12 : vector<1x16x128xf32> to vector<16x128xf32>
    %14 = vector.shape_cast %11 : vector<16x128xf32> to vector<1x16x128xf32>
    tpu.vector_store %arg4[%c0_7, %c0_8, %c0_9], %14 {strides = array<i32>} : memref<1x16x128xf32, #tpu.memory_space<vmem>>, vector<1x16x128xf32>,
    return
  }
  func.func @transform_0(%arg0: i32, %arg1: i32) -> (i32, i32) {
    %c1_i32 = arith.constant 1 : i32
    %0 = arith.muli %arg0, %c1_i32 : i32
    %1 = arith.addi %0, %arg1 : i32
    %c0_i32 = arith.constant 0 : i32
    %2 = arith.minsi %1, %c0_i32 : i32
    %c0_i32_0 = arith.constant 0 : i32
    %c0_i32_1 = arith.constant 0 : i32
    return %2, %c0_i32_0 : i32, i32
  }
  func.func @transform_1(%arg0: i32, %arg1: i32) -> (i32, i32) {
    %c1_i32 = arith.constant 1 : i32
    %0 = arith.muli %arg0, %c1_i32 : i32
    %1 = arith.addi %0, %arg1 : i32
    %c0_i32 = arith.constant 0 : i32
    %2 = arith.minsi %1, %c0_i32 : i32
    %c0_i32_0 = arith.constant 0 : i32
    %c0_i32_1 = arith.constant 0 : i32
    return %2, %c0_i32_0 : i32, i32
  }
  func.func @transform_2(%arg0: i32, %arg1: i32) -> (i32, i32, i32) {
    %c0_i32 = arith.constant 0 : i32
    %c0_i32_0 = arith.constant 0 : i32
    %c0_i32_1 = arith.constant 0 : i32
    return %arg0, %c0_i32, %c0_i32_0 : i32, i32, i32
  }
}

</mosaic_0001>

<llo_original>
// kernel: rmse_loss.1
$region0: #{rmse_loss.1}
  #allocation0 [shape = 'u32[]', space=smem, size = 0x4, offset = 0x4, fixed_abs, tag = 'smem constant byte address 0x4 - core index']
  #allocation1 [shape = 'u32[72,128]{1,0:T(1,128)}', space=vmem, size = 0x9000, scoped, tag = 'internal scratch']
  %s0 = inlined_call_operand.vmem [shape: f32[16,128], index: 0, kind: input, shape index: {}]
  %s1 = inlined_call_operand.vmem [shape: f32[16,128], index: 1, kind: input, shape index: {}]
  %s2 = inlined_call_operand.vmem [shape: f32[1,16,128], index: 2, kind: output, shape index: {}]
  %s3 = sld [smem:[#allocation0]]
  $region22: #{rmse_loss.1} parent=0
    _
  %s5 = ssub.s32 1, %s3
  %s6 = scalar_select 0, %s5, %s3
  // Predicated region
  $region2: #{rmse_loss.1} parent=0 // pred_check
    _
  $region3: #{rmse_loss.1} parent=0 // pred_check_branch
    %8 = sbr.rel (0) target = $region5
  $region4: #{rmse_loss.1} parent=0 // pred_region
    %s9 = sadd.s32 0, 0
    %p10 = scmp.lt.s32.totalorder %s9, 0
    %s11 = scalar_select %p10, %s9, 0
    %s12 = smul.u32 2, %s11
    %p13 = scmp.lt.s32.totalorder %s12, 1
    %s14 = scalar_select %p13, %s12, 1
    %s15 = smul.addr %s14, 8
    %s16 = scalar_lea.vmem %s0, %s15
    %s17 = sadd.s32 0, 0
    %p18 = scmp.lt.s32.totalorder %s17, 0
    %s19 = scalar_select %p18, %s17, 0
    %s20 = smul.u32 2, %s19
  $region5: #{rmse_loss.1} parent=0 // pred_fallthru
    _
  // Predicated region
  $region6: #{rmse_loss.1} parent=0 // pred_check
    _
  $region7: #{rmse_loss.1} parent=0 // pred_check_branch
    %22 = sbr.rel (0) target = $region9
  $region8: #{rmse_loss.1} parent=0 // pred_region
    %s23 = sadd.s32 0, 0
    %p24 = scmp.lt.s32.totalorder %s23, 0
    %s25 = scalar_select %p24, %s23, 0
    %s26 = smul.u32 2, %s25
    %p27 = scmp.lt.s32.totalorder %s26, 1
    %s28 = scalar_select %p27, %s26, 1
    %s29 = smul.addr %s28, 8
    %s30 = scalar_lea.vmem %s1, %s29
    %s31 = sadd.s32 0, 0
    %p32 = scmp.lt.s32.totalorder %s31, 0
    %s33 = scalar_select %p32, %s31, 0
    %s34 = smul.u32 2, %s33
  $region9: #{rmse_loss.1} parent=0 // pred_fallthru
    _
  %s35 = sadd.s32 0, 0
  %p36 = scmp.lt.s32.totalorder %s35, 0
  %s37 = scalar_select %p36, %s35, 0
  %s38 = smul.u32 2, %s37
  %p39 = scmp.lt.s32.totalorder %s38, 1
  %s40 = scalar_select %p39, %s38, 1
  %s41 = smul.addr %s40, 8
  %s42 = scalar_lea.vmem %s0, %s41
  %s43 = sadd.s32 0, 0
  %p44 = scmp.lt.s32.totalorder %s43, 0
  %s45 = scalar_select %p44, %s43, 0
  %s46 = smul.u32 2, %s45
  %p47 = scmp.lt.s32.totalorder %s46, 1
  %s48 = scalar_select %p47, %s46, 1
  %s49 = smul.addr %s48, 8
  %s50 = scalar_lea.vmem %s1, %s49
  %s51 = sadd.s32 0, 0
  %p52 = scmp.lt.s32.totalorder %s51, 0
  %s53 = scalar_select %p52, %s51, 0
  %s54 = smul.u32 2, %s53
  %p55 = scmp.lt.s32.totalorder %s54, 1
  %s56 = scalar_select %p55, %s54, 1
  %s57 = smul.addr %s56, 8
  %s58 = scalar_lea.vmem %s0, %s57
  %s59 = sadd.s32 0, 0
  %p60 = scmp.lt.s32.totalorder %s59, 0
  %s61 = scalar_select %p60, %s59, 0
  %s62 = smul.u32 2, %s61
  %s63 = sadd.s32 0, 0
  %p64 = scmp.lt.s32.totalorder %s63, 0
  %s65 = scalar_select %p64, %s63, 0
  %s66 = smul.u32 2, %s65
  %p67 = scmp.lt.s32.totalorder %s66, 1
  %s68 = scalar_select %p67, %s66, 1
  %s69 = smul.addr %s68, 8
  %s70 = scalar_lea.vmem %s1, %s69
  %s71 = sadd.s32 0, 0
  %p72 = scmp.lt.s32.totalorder %s71, 0
  %s73 = scalar_select %p72, %s71, 0
  %s74 = smul.u32 2, %s73
  %p75 = scmp.eq.s32.totalorder 0, 0
  // Predicated region
  $region10: #{rmse_loss.1} parent=0 // pred_check
    %p76 = pneg %p75
  $region11: #{rmse_loss.1} parent=0 // pred_check_branch
    %78 = sbr.rel (%p76) target = $region13
  $region12: #{rmse_loss.1} parent=0 // pred_region
    %79 = vst [vmem:[%s2] sm:$0xff] 0.0
    %80 = vst [vmem:[%s2 + $0x8] sm:$0xff] 0.0
  $region13: #{rmse_loss.1} parent=0 // pred_fallthru
    _
  %v81 = vld [vmem:[%s58] sm:$0xff]
  %v82 = vld [vmem:[%s58 + $0x8] sm:$0xff]
  %v83 = vld [vmem:[%s70] sm:$0xff]
  %v84 = vld [vmem:[%s70 + $0x8] sm:$0xff]
  %v85 = vsub.f32 %v81, %v83
  %v86 = vsub.f32 %v82, %v84
  %v87 = vmul.f32 %v85, %v85
  %v88 = vmul.f32 %v86, %v86
  %v89 = vadd.f32 %v87, 0.0
  %v90 = vadd.f32 %v88, 0.0
  %v91 = vld [vmem:[%s2] sm:$0xff]
  %v92 = vld [vmem:[%s2 + $0x8] sm:$0xff]
  %v93 = vadd.f32 %v91, %v89
  %v94 = vadd.f32 %v92, %v90
  %95 = vst [vmem:[%s2] sm:$0xff] %v93
  %96 = vst [vmem:[%s2 + $0x8] sm:$0xff] %v94
  // Predicated region
  $region14: #{rmse_loss.1} parent=0 // pred_check
    _
  $region15: #{rmse_loss.1} parent=0 // pred_check_branch
    %98 = sbr.rel (0) target = $region17
  $region16: #{rmse_loss.1} parent=0 // pred_region
    _
  $region17: #{rmse_loss.1} parent=0 // pred_fallthru
    _
  // Predicated region
  $region18: #{rmse_loss.1} parent=0 // pred_check
    _
  $region19: #{rmse_loss.1} parent=0 // pred_check_branch
    %100 = sbr.rel (0) target = $region21
  $region20: #{rmse_loss.1} parent=0 // pred_region
    _
  $region21: #{rmse_loss.1} parent=0 // pred_fallthru
    _

</llo_original>
